<compile_context>
chip_gen: v5e
topology: v5e:2x2
jax: 0.10.0
libtpu: 0.0.40
codegen_flags: <defaults>
</compile_context>

<pallas_src>
import jax
import jax.numpy as jnp
from jax.experimental import pallas as pl
from jax.experimental.pallas import tpu as pltpu

LANE_TILE_MAX = 2048  # spatial (lane) tile size; multiple of 128, VMEM-friendly on v5e/v6e/v7x


def _round_up(x, m):
    return (x + m - 1) // m * m


# ----------------------------------------------------------------------------
# Pallas kernel: fused masked nan-MSE loss, tiled over the flattened spatial axis
# ----------------------------------------------------------------------------
def loss_kernel(obs_ref, prd_ref, mask_ref, o_ref,
                num_uv_acc, den_uv_acc, num_sic_acc, den_sic_acc):
    step = pl.program_id(0)

    @pl.when(step == 0)
    def _init():
        num_uv_acc[...] = jnp.zeros_like(num_uv_acc)
        den_uv_acc[...] = jnp.zeros_like(den_uv_acc)
        num_sic_acc[...] = jnp.zeros_like(num_sic_acc)
        den_sic_acc[...] = jnp.zeros_like(den_sic_acc)

    # Channel slices, each (B, tile): obs/prd are packed as (3, B, HW_pad).
    u_o = obs_ref[0] * 30.0
    v_o = obs_ref[1] * 30.0
    sic_o = obs_ref[2] * 100.0
    u_p = prd_ref[0] * 30.0
    v_p = prd_ref[1] * 30.0
    sic_p = prd_ref[2] * 100.0

    err_uv = jnp.square(u_o - u_p) + jnp.square(v_o - v_p)   # (B, tile)
    err_sic = jnp.square(sic_o - sic_p)                       # (B, tile)
    # vel_o / vel_p / err_vel in the PyTorch forward are dead code (never used in the
    # returned loss) and are intentionally not computed.

    ocean = mask_ref[...] == 0.0                              # (1, tile)

    def batch_nanmean(err):                                   # (B, tile) -> (1, tile)
        finite = jnp.logical_not(jnp.isnan(err))
        s = jnp.sum(jnp.where(finite, err, 0.0), axis=0, keepdims=True)
        c = jnp.sum(jnp.where(finite, 1.0, 0.0), axis=0, keepdims=True)
        return s / c                                          # 0/0 -> NaN == torch.nanmean

    def masked_partials(pix):                                 # tile's numerator / count
        valid = jnp.logical_and(ocean, jnp.logical_not(jnp.isnan(pix)))
        num = jnp.sum(jnp.where(valid, pix, 0.0), axis=1, keepdims=True)   # (1, 1)
        den = jnp.sum(jnp.where(valid, 1.0, 0.0), axis=1, keepdims=True)   # (1, 1)
        return num, den

    nu, du = masked_partials(batch_nanmean(err_uv))
    ns, ds = masked_partials(batch_nanmean(err_sic))

    num_uv_acc[...] += nu
    den_uv_acc[...] += du
    num_sic_acc[...] += ns
    den_sic_acc[...] += ds

    @pl.when(step == pl.num_programs(0) - 1)
    def _finalize():
        o_ref[...] = 10.0 * (num_uv_acc[...] / den_uv_acc[...]
                             + num_sic_acc[...] / den_sic_acc[...])


# ----------------------------------------------------------------------------
# Wrapper: pack operands, pad spatial axis to lane-dense tiles, call the kernel
# ----------------------------------------------------------------------------
def custom_loss_forward(obs, prd, landmask, forecast=None):
    """Pallas TPU equivalent of custom_loss(landmask, forecast)(obs, prd)."""
    del forecast  # `f = self.forecast` is assigned but never used in the reference
    B, C, H, W = obs.shape
    assert C >= 3 and prd.shape == obs.shape and landmask.shape == (H, W)
    HW = H * W

    # Pack into 3 inputs, channels first, spatial flattened onto the lane axis:
    #   obs/prd -> (3, B, HW), landmask -> (1, HW)
    obs_k = jnp.transpose(obs[:, :3].reshape(B, 3, HW), (1, 0, 2)).astype(jnp.float32)
    prd_k = jnp.transpose(prd[:, :3].reshape(B, 3, HW), (1, 0, 2)).astype(jnp.float32)
    mask_k = landmask.reshape(1, HW).astype(jnp.float32)

    # Lane-dense tiling of the spatial axis (multiple of 128), grid over tiles.
    hw128 = _round_up(HW, 128)
    tile = min(hw128, LANE_TILE_MAX)
    hw_pad = _round_up(hw128, tile)
    if hw_pad != HW:
        pad = hw_pad - HW
        obs_k = jnp.pad(obs_k, ((0, 0), (0, 0), (0, pad)))
        prd_k = jnp.pad(prd_k, ((0, 0), (0, 0), (0, pad)))
        # pad the mask with 1 (= land) so padded pixels never enter the loss
        mask_k = jnp.pad(mask_k, ((0, 0), (0, pad)), constant_values=1.0)
    grid = (hw_pad // tile,)

    flops = 24 * B * hw_pad + 16 * hw_pad
    bytes_accessed = (2 * 3 * B + 1) * hw_pad * 4 + 4

    out = pl.pallas_call(
        loss_kernel,
        out_shape=jax.ShapeDtypeStruct((1, 1), jnp.float32),
        grid_spec=pltpu.PrefetchScalarGridSpec(
            num_scalar_prefetch=0,
            grid=grid,
            in_specs=[
                pl.BlockSpec((3, B, tile), lambda i: (0, 0, i)),
                pl.BlockSpec((3, B, tile), lambda i: (0, 0, i)),
                pl.BlockSpec((1, tile), lambda i: (0, i)),
            ],
            out_specs=pl.BlockSpec((1, 1), lambda i: (0, 0)),
            scratch_shapes=[pltpu.VMEM((1, 1), jnp.float32)] * 4,
        ),
        compiler_params=pltpu.CompilerParams(
            dimension_semantics=("arbitrary",)),
        cost_estimate=pl.CostEstimate(
            flops=flops, transcendentals=0, bytes_accessed=bytes_accessed),
    )(obs_k, prd_k, mask_k)
    return out[0, 0]


# ----------------------------------------------------------------------------
# Pure-JAX reference for validation
# ----------------------------------------------------------------------------
def reference_loss(obs, prd, landmask):
    u_o, v_o, sic_o = obs[:, 0] * 30.0, obs[:, 1] * 30.0, obs[:, 2] * 100.0
    u_p, v_p, sic_p = prd[:, 0] * 30.0, prd[:, 1] * 30.0, prd[:, 2] * 100.0
    err_uv = jnp.square(u_o - u_p) + jnp.square(v_o - v_p)
    err_sic = jnp.square(sic_o - sic_p)
    pix_uv = jnp.nanmean(err_uv, axis=0)
    pix_sic = jnp.nanmean(err_sic, axis=0)
    ocean = landmask == 0
    e1 = jnp.nanmean(jnp.where(ocean, pix_uv, jnp.nan))
    e2 = jnp.nanmean(jnp.where(ocean, pix_sic, jnp.nan))
    return e1 * 10.0 + e2 * 10.0


if __name__ == "__main__":
    key = jax.random.PRNGKey(0)
    B, C, H, W = 2, 3, 16, 16

    k1, k2 = jax.random.split(key)
    obs = jax.random.normal(k1, (B, C, H, W), jnp.float32)
    prd = jax.random.normal(k2, (B, C, H, W), jnp.float32)
    # a few NaNs to exercise the nanmean paths (only in batch 0, so per-pixel
    # batch means stay finite, as in typical real data)
    obs = obs.at[0, :, 0, 0].set(jnp.nan)
    prd = prd.at[0, :, 3, 5].set(jnp.nan)

    # deterministic landmask: ~25% land (1), rest ocean (0)
    rows = jnp.arange(H)[:, None]
    cols = jnp.arange(W)[None, :]
    landmask = ((rows + cols) % 4 == 0).astype(jnp.int32)

    loss = custom_loss_forward(obs, prd, landmask, forecast=1)
    jax.block_until_ready(loss)

    ref = reference_loss(obs, prd, landmask)
    assert loss.shape == ()
    assert jnp.allclose(loss, ref, rtol=1e-4, atol=1e-4), (float(loss), float(ref))
    print("KERNEL_OK")
</pallas_src>

<mosaic_0001>
module attributes {stable_mosaic.version = 11 : i64} {
  func.func @loss_kernel(%arg0: i32, %arg1: memref<3x2x256xf32, #tpu.memory_space<vmem>>, %arg2: memref<3x2x256xf32, #tpu.memory_space<vmem>>, %arg3: memref<1x256xf32, #tpu.memory_space<vmem>>, %arg4: memref<1x1xf32, #tpu.memory_space<vmem>>, %arg5: memref<1x1xf32, #tpu.memory_space<vmem>>, %arg6: memref<1x1xf32, #tpu.memory_space<vmem>>, %arg7: memref<1x1xf32, #tpu.memory_space<vmem>>, %arg8: memref<1x1xf32, #tpu.memory_space<vmem>>) attributes {dimension_semantics = [#tpu.dimension_semantics<arbitrary>], iteration_bounds = array<i64: 1>, scalar_prefetch = 0 : i64, scratch_operands = 4 : i64, tpu.core_type = #tpu.core_type<tc>, window_params = [{transform_indices = @transform_0, window_bounds = array<i64: 3, 2, 256>}, {transform_indices = @transform_1, window_bounds = array<i64: 3, 2, 256>}, {transform_indices = @transform_2, window_bounds = array<i64: 1, 256>}, {pipeline_mode = #tpu.pipeline_mode<synchronous>, transform_indices = @transform_3, window_bounds = array<i64: 1, 1>}]} {
    %c0_i32 = arith.constant 0 : i32
    %0 = arith.cmpi eq, %arg0, %c0_i32 : i32
    %1 = arith.extui %0 : i1 to i32
    %c0_i32_0 = arith.constant 0 : i32
    %2 = arith.cmpi ne, %1, %c0_i32_0 : i32
    scf.if %2 {
      %cst_66 = arith.constant 0.000000e+00 : f32
      %100 = vector.broadcast %cst_66 : f32 to vector<1x1xf32>
      %c0_67 = arith.constant 0 : index
      %c0_68 = arith.constant 0 : index
      %101 = vector.load %arg5[%c0_67, %c0_68] : memref<1x1xf32, #tpu.memory_space<vmem>>, vector<1x1xf32>
      tpu.vector_store %arg5[%c0_67, %c0_68], %100 {strides = array<i32>} : memref<1x1xf32, #tpu.memory_space<vmem>>, vector<1x1xf32>,
      %cst_69 = arith.constant 0.000000e+00 : f32
      %102 = vector.broadcast %cst_69 : f32 to vector<1x1xf32>
      %c0_70 = arith.constant 0 : index
      %c0_71 = arith.constant 0 : index
      %103 = vector.load %arg6[%c0_70, %c0_71] : memref<1x1xf32, #tpu.memory_space<vmem>>, vector<1x1xf32>
      tpu.vector_store %arg6[%c0_70, %c0_71], %102 {strides = array<i32>} : memref<1x1xf32, #tpu.memory_space<vmem>>, vector<1x1xf32>,
      %cst_72 = arith.constant 0.000000e+00 : f32
      %104 = vector.broadcast %cst_72 : f32 to vector<1x1xf32>
      %c0_73 = arith.constant 0 : index
      %c0_74 = arith.constant 0 : index
      %105 = vector.load %arg7[%c0_73, %c0_74] : memref<1x1xf32, #tpu.memory_space<vmem>>, vector<1x1xf32>
      tpu.vector_store %arg7[%c0_73, %c0_74], %104 {strides = array<i32>} : memref<1x1xf32, #tpu.memory_space<vmem>>, vector<1x1xf32>,
      %cst_75 = arith.constant 0.000000e+00 : f32
      %106 = vector.broadcast %cst_75 : f32 to vector<1x1xf32>
      %c0_76 = arith.constant 0 : index
      %c0_77 = arith.constant 0 : index
      %107 = vector.load %arg8[%c0_76, %c0_77] : memref<1x1xf32, #tpu.memory_space<vmem>>, vector<1x1xf32>
      tpu.vector_store %arg8[%c0_76, %c0_77], %106 {strides = array<i32>} : memref<1x1xf32, #tpu.memory_space<vmem>>, vector<1x1xf32>,
    } else {
    }
    %c0 = arith.constant 0 : index
    %c0_1 = arith.constant 0 : index
    %c0_2 = arith.constant 0 : index
    %3 = vector.load %arg1[%c0, %c0_1, %c0_2] : memref<3x2x256xf32, #tpu.memory_space<vmem>>, vector<1x2x256xf32>
    %4 = vector.shape_cast %3 : vector<1x2x256xf32> to vector<2x256xf32>
    %cst = arith.constant 3.000000e+01 : f32
    %5 = vector.broadcast %cst : f32 to vector<2x256xf32>
    %6 = arith.mulf %4, %5 : vector<2x256xf32>
    %c1 = arith.constant 1 : index
    %c0_3 = arith.constant 0 : index
    %c0_4 = arith.constant 0 : index
    %7 = vector.load %arg1[%c1, %c0_3, %c0_4] : memref<3x2x256xf32, #tpu.memory_space<vmem>>, vector<1x2x256xf32>
    %8 = vector.shape_cast %7 : vector<1x2x256xf32> to vector<2x256xf32>
    %cst_5 = arith.constant 3.000000e+01 : f32
    %9 = vector.broadcast %cst_5 : f32 to vector<2x256xf32>
    %10 = arith.mulf %8, %9 : vector<2x256xf32>
    %c2 = arith.constant 2 : index
    %c0_6 = arith.constant 0 : index
    %c0_7 = arith.constant 0 : index
    %11 = vector.load %arg1[%c2, %c0_6, %c0_7] : memref<3x2x256xf32, #tpu.memory_space<vmem>>, vector<1x2x256xf32>
    %12 = vector.shape_cast %11 : vector<1x2x256xf32> to vector<2x256xf32>
    %cst_8 = arith.constant 1.000000e+02 : f32
    %13 = vector.broadcast %cst_8 : f32 to vector<2x256xf32>
    %14 = arith.mulf %12, %13 : vector<2x256xf32>
    %c0_9 = arith.constant 0 : index
    %c0_10 = arith.constant 0 : index
    %c0_11 = arith.constant 0 : index
    %15 = vector.load %arg2[%c0_9, %c0_10, %c0_11] : memref<3x2x256xf32, #tpu.memory_space<vmem>>, vector<1x2x256xf32>
    %16 = vector.shape_cast %15 : vector<1x2x256xf32> to vector<2x256xf32>
    %cst_12 = arith.constant 3.000000e+01 : f32
    %17 = vector.broadcast %cst_12 : f32 to vector<2x256xf32>
    %18 = arith.mulf %16, %17 : vector<2x256xf32>
    %c1_13 = arith.constant 1 : index
    %c0_14 = arith.constant 0 : index
    %c0_15 = arith.constant 0 : index
    %19 = vector.load %arg2[%c1_13, %c0_14, %c0_15] : memref<3x2x256xf32, #tpu.memory_space<vmem>>, vector<1x2x256xf32>
    %20 = vector.shape_cast %19 : vector<1x2x256xf32> to vector<2x256xf32>
    %cst_16 = arith.constant 3.000000e+01 : f32
    %21 = vector.broadcast %cst_16 : f32 to vector<2x256xf32>
    %22 = arith.mulf %20, %21 : vector<2x256xf32>
    %c2_17 = arith.constant 2 : index
    %c0_18 = arith.constant 0 : index
    %c0_19 = arith.constant 0 : index
    %23 = vector.load %arg2[%c2_17, %c0_18, %c0_19] : memref<3x2x256xf32, #tpu.memory_space<vmem>>, vector<1x2x256xf32>
    %24 = vector.shape_cast %23 : vector<1x2x256xf32> to vector<2x256xf32>
    %cst_20 = arith.constant 1.000000e+02 : f32
    %25 = vector.broadcast %cst_20 : f32 to vector<2x256xf32>
    %26 = arith.mulf %24, %25 : vector<2x256xf32>
    %27 = arith.subf %6, %18 : vector<2x256xf32>
    %28 = arith.mulf %27, %27 : vector<2x256xf32>
    %29 = arith.subf %10, %22 : vector<2x256xf32>
    %30 = arith.mulf %29, %29 : vector<2x256xf32>
    %31 = arith.addf %28, %30 : vector<2x256xf32>
    %32 = arith.subf %14, %26 : vector<2x256xf32>
    %33 = arith.mulf %32, %32 : vector<2x256xf32>
    %c0_21 = arith.constant 0 : index
    %c0_22 = arith.constant 0 : index
    %34 = vector.load %arg3[%c0_21, %c0_22] : memref<1x256xf32, #tpu.memory_space<vmem>>, vector<1x256xf32>
    %cst_23 = arith.constant 0.000000e+00 : f32
    %35 = vector.broadcast %cst_23 : f32 to vector<1x256xf32>
    %36 = arith.cmpf oeq, %34, %35 : vector<1x256xf32>
    %37 = arith.cmpf one, %31, %31 : vector<2x256xf32>
    %cst_24 = arith.constant dense<true> : vector<2x256xi1>
    %38 = arith.xori %37, %cst_24 : vector<2x256xi1>
    %cst_25 = arith.constant 0.000000e+00 : f32
    %39 = vector.broadcast %cst_25 : f32 to vector<2x256xf32>
    %40 = arith.select %38, %31, %39 : vector<2x256xi1>, vector<2x256xf32>
    %cst_26 = arith.constant dense<0.000000e+00> : vector<256xf32>
    %41 = vector.multi_reduction <add>, %40, %cst_26 [0] : vector<2x256xf32> to vector<256xf32>
    %42 = vector.shape_cast %41 : vector<256xf32> to vector<1x256xf32>
    %cst_27 = arith.constant 1.000000e+00 : f32
    %cst_28 = arith.constant 0.000000e+00 : f32
    %43 = vector.broadcast %cst_27 : f32 to vector<2x256xf32>
    %44 = vector.broadcast %cst_28 : f32 to vector<2x256xf32>
    %45 = arith.select %38, %43, %44 : vector<2x256xi1>, vector<2x256xf32>
    %cst_29 = arith.constant dense<0.000000e+00> : vector<256xf32>
    %46 = vector.multi_reduction <add>, %45, %cst_29 [0] : vector<2x256xf32> to vector<256xf32>
    %47 = vector.shape_cast %46 : vector<256xf32> to vector<1x256xf32>
    %48 = arith.divf %42, %47 : vector<1x256xf32>
    %49 = arith.cmpf one, %48, %48 : vector<1x256xf32>
    %cst_30 = arith.constant dense<true> : vector<1x256xi1>
    %50 = arith.xori %49, %cst_30 : vector<1x256xi1>
    %51 = arith.andi %36, %50 : vector<1x256xi1>
    %cst_31 = arith.constant 0.000000e+00 : f32
    %52 = vector.broadcast %cst_31 : f32 to vector<1x256xf32>
    %53 = arith.select %51, %48, %52 : vector<1x256xi1>, vector<1x256xf32>
    %cst_32 = arith.constant dense<0.000000e+00> : vector<1xf32>
    %54 = vector.multi_reduction <add>, %53, %cst_32 [1] : vector<1x256xf32> to vector<1xf32>
    %55 = vector.shape_cast %54 : vector<1xf32> to vector<1x1xf32>
    %cst_33 = arith.constant 1.000000e+00 : f32
    %cst_34 = arith.constant 0.000000e+00 : f32
    %56 = vector.broadcast %cst_33 : f32 to vector<1x256xf32>
    %57 = vector.broadcast %cst_34 : f32 to vector<1x256xf32>
    %58 = arith.select %51, %56, %57 : vector<1x256xi1>, vector<1x256xf32>
    %cst_35 = arith.constant dense<0.000000e+00> : vector<1xf32>
    %59 = vector.multi_reduction <add>, %58, %cst_35 [1] : vector<1x256xf32> to vector<1xf32>
    %60 = vector.shape_cast %59 : vector<1xf32> to vector<1x1xf32>
    %61 = arith.cmpf one, %33, %33 : vector<2x256xf32>
    %cst_36 = arith.constant dense<true> : vector<2x256xi1>
    %62 = arith.xori %61, %cst_36 : vector<2x256xi1>
    %cst_37 = arith.constant 0.000000e+00 : f32
    %63 = vector.broadcast %cst_37 : f32 to vector<2x256xf32>
    %64 = arith.select %62, %33, %63 : vector<2x256xi1>, vector<2x256xf32>
    %cst_38 = arith.constant dense<0.000000e+00> : vector<256xf32>
    %65 = vector.multi_reduction <add>, %64, %cst_38 [0] : vector<2x256xf32> to vector<256xf32>
    %66 = vector.shape_cast %65 : vector<256xf32> to vector<1x256xf32>
    %cst_39 = arith.constant 1.000000e+00 : f32
    %cst_40 = arith.constant 0.000000e+00 : f32
    %67 = vector.broadcast %cst_39 : f32 to vector<2x256xf32>
    %68 = vector.broadcast %cst_40 : f32 to vector<2x256xf32>
    %69 = arith.select %62, %67, %68 : vector<2x256xi1>, vector<2x256xf32>
    %cst_41 = arith.constant dense<0.000000e+00> : vector<256xf32>
    %70 = vector.multi_reduction <add>, %69, %cst_41 [0] : vector<2x256xf32> to vector<256xf32>
    %71 = vector.shape_cast %70 : vector<256xf32> to vector<1x256xf32>
    %72 = arith.divf %66, %71 : vector<1x256xf32>
    %73 = arith.cmpf one, %72, %72 : vector<1x256xf32>
    %cst_42 = arith.constant dense<true> : vector<1x256xi1>
    %74 = arith.xori %73, %cst_42 : vector<1x256xi1>
    %75 = arith.andi %36, %74 : vector<1x256xi1>
    %cst_43 = arith.constant 0.000000e+00 : f32
    %76 = vector.broadcast %cst_43 : f32 to vector<1x256xf32>
    %77 = arith.select %75, %72, %76 : vector<1x256xi1>, vector<1x256xf32>
    %cst_44 = arith.constant dense<0.000000e+00> : vector<1xf32>
    %78 = vector.multi_reduction <add>, %77, %cst_44 [1] : vector<1x256xf32> to vector<1xf32>
    %79 = vector.shape_cast %78 : vector<1xf32> to vector<1x1xf32>
    %cst_45 = arith.constant 1.000000e+00 : f32
    %cst_46 = arith.constant 0.000000e+00 : f32
    %80 = vector.broadcast %cst_45 : f32 to vector<1x256xf32>
    %81 = vector.broadcast %cst_46 : f32 to vector<1x256xf32>
    %82 = arith.select %75, %80, %81 : vector<1x256xi1>, vector<1x256xf32>
    %cst_47 = arith.constant dense<0.000000e+00> : vector<1xf32>
    %83 = vector.multi_reduction <add>, %82, %cst_47 [1] : vector<1x256xf32> to vector<1xf32>
    %84 = vector.shape_cast %83 : vector<1xf32> to vector<1x1xf32>
    %c0_48 = arith.constant 0 : index
    %c0_49 = arith.constant 0 : index
    %85 = vector.load %arg5[%c0_48, %c0_49] : memref<1x1xf32, #tpu.memory_space<vmem>>, vector<1x1xf32>
    %86 = arith.addf %85, %55 : vector<1x1xf32>
    %c0_50 = arith.constant 0 : index
    %c0_51 = arith.constant 0 : index
    %87 = vector.load %arg5[%c0_50, %c0_51] : memref<1x1xf32, #tpu.memory_space<vmem>>, vector<1x1xf32>
    tpu.vector_store %arg5[%c0_50, %c0_51], %86 {strides = array<i32>} : memref<1x1xf32, #tpu.memory_space<vmem>>, vector<1x1xf32>,
    %c0_52 = arith.constant 0 : index
    %c0_53 = arith.constant 0 : index
    %88 = vector.load %arg6[%c0_52, %c0_53] : memref<1x1xf32, #tpu.memory_space<vmem>>, vector<1x1xf32>
    %89 = arith.addf %88, %60 : vector<1x1xf32>
    %c0_54 = arith.constant 0 : index
    %c0_55 = arith.constant 0 : index
    %90 = vector.load %arg6[%c0_54, %c0_55] : memref<1x1xf32, #tpu.memory_space<vmem>>, vector<1x1xf32>
    tpu.vector_store %arg6[%c0_54, %c0_55], %89 {strides = array<i32>} : memref<1x1xf32, #tpu.memory_space<vmem>>, vector<1x1xf32>,
    %c0_56 = arith.constant 0 : index
    %c0_57 = arith.constant 0 : index
    %91 = vector.load %arg7[%c0_56, %c0_57] : memref<1x1xf32, #tpu.memory_space<vmem>>, vector<1x1xf32>
    %92 = arith.addf %91, %79 : vector<1x1xf32>
    %c0_58 = arith.constant 0 : index
    %c0_59 = arith.constant 0 : index
    %93 = vector.load %arg7[%c0_58, %c0_59] : memref<1x1xf32, #tpu.memory_space<vmem>>, vector<1x1xf32>
    tpu.vector_store %arg7[%c0_58, %c0_59], %92 {strides = array<i32>} : memref<1x1xf32, #tpu.memory_space<vmem>>, vector<1x1xf32>,
    %c0_60 = arith.constant 0 : index
    %c0_61 = arith.constant 0 : index
    %94 = vector.load %arg8[%c0_60, %c0_61] : memref<1x1xf32, #tpu.memory_space<vmem>>, vector<1x1xf32>
    %95 = arith.addf %94, %84 : vector<1x1xf32>
    %c0_62 = arith.constant 0 : index
    %c0_63 = arith.constant 0 : index
    %96 = vector.load %arg8[%c0_62, %c0_63] : memref<1x1xf32, #tpu.memory_space<vmem>>, vector<1x1xf32>
    tpu.vector_store %arg8[%c0_62, %c0_63], %95 {strides = array<i32>} : memref<1x1xf32, #tpu.memory_space<vmem>>, vector<1x1xf32>,
    %c0_i32_64 = arith.constant 0 : i32
    %97 = arith.cmpi eq, %arg0, %c0_i32_64 : i32
    %98 = arith.extui %97 : i1 to i32
    %c0_i32_65 = arith.constant 0 : i32
    %99 = arith.cmpi ne, %98, %c0_i32_65 : i32
    scf.if %99 {
      %c0_66 = arith.constant 0 : index
      %c0_67 = arith.constant 0 : index
      %100 = vector.load %arg5[%c0_66, %c0_67] : memref<1x1xf32, #tpu.memory_space<vmem>>, vector<1x1xf32>
      %c0_68 = arith.constant 0 : index
      %c0_69 = arith.constant 0 : index
      %101 = vector.load %arg6[%c0_68, %c0_69] : memref<1x1xf32, #tpu.memory_space<vmem>>, vector<1x1xf32>
      %102 = arith.divf %100, %101 : vector<1x1xf32>
      %c0_70 = arith.constant 0 : index
      %c0_71 = arith.constant 0 : index
      %103 = vector.load %arg7[%c0_70, %c0_71] : memref<1x1xf32, #tpu.memory_space<vmem>>, vector<1x1xf32>
      %c0_72 = arith.constant 0 : index
      %c0_73 = arith.constant 0 : index
      %104 = vector.load %arg8[%c0_72, %c0_73] : memref<1x1xf32, #tpu.memory_space<vmem>>, vector<1x1xf32>
      %105 = arith.divf %103, %104 : vector<1x1xf32>
      %106 = arith.addf %102, %105 : vector<1x1xf32>
      %cst_74 = arith.constant 1.000000e+01 : f32
      %107 = vector.broadcast %cst_74 : f32 to vector<1x1xf32>
      %108 = arith.mulf %107, %106 : vector<1x1xf32>
      %c0_75 = arith.constant 0 : index
      %c0_76 = arith.constant 0 : index
      %109 = vector.load %arg4[%c0_75, %c0_76] : memref<1x1xf32, #tpu.memory_space<vmem>>, vector<1x1xf32>
      tpu.vector_store %arg4[%c0_75, %c0_76], %108 {strides = array<i32>} : memref<1x1xf32, #tpu.memory_space<vmem>>, vector<1x1xf32>,
    } else {
    }
    return
  }
  func.func @transform_0(%arg0: i32) -> (i32, i32, i32) {
    %c0_i32 = arith.constant 0 : i32
    %c0_i32_0 = arith.constant 0 : i32
    %c0_i32_1 = arith.constant 0 : i32
    return %c0_i32, %c0_i32_0, %arg0 : i32, i32, i32
  }
  func.func @transform_1(%arg0: i32) -> (i32, i32, i32) {
    %c0_i32 = arith.constant 0 : i32
    %c0_i32_0 = arith.constant 0 : i32
    %c0_i32_1 = arith.constant 0 : i32
    return %c0_i32, %c0_i32_0, %arg0 : i32, i32, i32
  }
  func.func @transform_2(%arg0: i32) -> (i32, i32) {
    %c0_i32 = arith.constant 0 : i32
    %c0_i32_0 = arith.constant 0 : i32
    return %c0_i32, %arg0 : i32, i32
  }
  func.func @transform_3(%arg0: i32) -> (i32, i32) {
    %c0_i32 = arith.constant 0 : i32
    %c0_i32_0 = arith.constant 0 : i32
    %c0_i32_1 = arith.constant 0 : i32
    return %c0_i32, %c0_i32_0 : i32, i32
  }
}

</mosaic_0001>

<llo_original>
// kernel: tpu_custom_call.1
$region0: #{tpu_custom_call.1}
  #allocation0 [shape = 'u32[]', space=smem, size = 0x4, offset = 0x4, fixed_abs, tag = 'smem constant byte address 0x4 - core index']
  #allocation1 [shape = 'u32[72,128]{1,0:T(1,128)}', space=vmem, size = 0x9000, scoped, tag = 'internal scratch']
  #allocation2 [shape = 'f32[1,1]{1,0:T(1,128)}', space=vmem, size = 0x200, scoped, tag = 'scratch operand']
  #allocation3 [shape = 'f32[1,1]{1,0:T(1,128)}', space=vmem, size = 0x200, scoped, tag = 'scratch operand']
  #allocation4 [shape = 'f32[1,1]{1,0:T(1,128)}', space=vmem, size = 0x200, scoped, tag = 'scratch operand']
  #allocation5 [shape = 'f32[1,1]{1,0:T(1,128)}', space=vmem, size = 0x200, scoped, tag = 'scratch operand']
  %s0 = inlined_call_operand.hbm [shape: f32[3,2,256], index: 0, kind: input, shape index: {}]
  %s1 = inlined_call_operand.hbm [shape: f32[3,2,256], index: 1, kind: input, shape index: {}]
  %s2 = inlined_call_operand.hbm [shape: f32[1,256], index: 2, kind: input, shape index: {}]
  %s3 = inlined_call_operand.hbm [shape: f32[1,1], index: 3, kind: output, shape index: {}]
  %s4 = sld [smem:[#allocation0]]
  $region42: #{tpu_custom_call.1} parent=0
    _
  %s6 = ssub.s32 1, %s4
  %s7 = scalar_select 0, %s6, %s4
  $region1: #{tpu_custom_call.1} parent=0
    #allocation6 [shape = 'u8[6144]{0}', space=vmem, size = 0x1800, scoped, tag = 'input window, operand 0, single buffered']
    #allocation7 [shape = 's32[1]{0}', space=sflag, size = 0x4, scoped, tag = 'scoped memory for tpu_custom_call.1']
    #allocation8 [shape = 's32[1]{0}', space=sflag, size = 0x4, scoped, tag = 'scoped memory for tpu_custom_call.1']
    #allocation9 [shape = 'u8[6144]{0}', space=vmem, size = 0x1800, scoped, tag = 'input window, operand 1, single buffered']
    #allocation10 [shape = 's32[1]{0}', space=sflag, size = 0x4, scoped, tag = 'scoped memory for tpu_custom_call.1']
    #allocation11 [shape = 'u8[1024]{0}', space=vmem, size = 0x400, scoped, tag = 'input window, operand 2, single buffered']
    #allocation12 [shape = 'u8[512]{0}', space=vmem, size = 0x400, scoped, tag = 'output window, operand 0, single buffered']
    %8 = vsyncpa [#allocation7], 0
    %9 = vsyncpa [#allocation10], 0
    %10 = vsyncpa [#allocation8], 0
    // Predicated region
    $region2: #{tpu_custom_call.1} parent=1 // pred_check
      _
    $region3: #{tpu_custom_call.1} parent=1 // pred_check_branch
      %12 = sbr.rel (0) target = $region5
    $region4: #{tpu_custom_call.1} parent=1 // pred_region
      %14 = vsyncadd [#allocation7], 0
      %s15 = sshll.u32 %s0, 4
      %s16 = int_to_ptr.hbm [resolvable:$true] %s15
      %s17 = sshll.u32 [#allocation6], 4
      %s18 = int_to_ptr.vmem [resolvable:$true] %s17
      %23 = dma.hbm_to_vmem [thread:$0]  %s16, 192, %s18, [#allocation7], 64, 64, 4
    $region5: #{tpu_custom_call.1} parent=1 // pred_fallthru
      _
    // Predicated region
    $region6: #{tpu_custom_call.1} parent=1 // pred_check
      _
    $region7: #{tpu_custom_call.1} parent=1 // pred_check_branch
      %25 = sbr.rel (0) target = $region9
    $region8: #{tpu_custom_call.1} parent=1 // pred_region
      %27 = vsyncadd [#allocation10], 0
      %s28 = sshll.u32 %s1, 4
      %s29 = int_to_ptr.hbm [resolvable:$true] %s28
      %s30 = sshll.u32 [#allocation9], 4
      %s31 = int_to_ptr.vmem [resolvable:$true] %s30
      %36 = dma.hbm_to_vmem [thread:$0]  %s29, 192, %s31, [#allocation10], 64, 64, 4
    $region9: #{tpu_custom_call.1} parent=1 // pred_fallthru
      _
    // Predicated region
    $region10: #{tpu_custom_call.1} parent=1 // pred_check
      _
    $region11: #{tpu_custom_call.1} parent=1 // pred_check_branch
      %38 = sbr.rel (0) target = $region13
    $region12: #{tpu_custom_call.1} parent=1 // pred_region
      %40 = vsyncadd [#allocation10], 0
      %s42 = sshll.u32 %s2, 4
      %s43 = int_to_ptr.hbm [resolvable:$true] %s42
      %s44 = sshll.u32 [#allocation11], 4
      %s45 = int_to_ptr.vmem [resolvable:$true] %s44
      %47 = dma.hbm_to_vmem [thread:$0]  %s43, 32, %s45, [#allocation10]
    $region13: #{tpu_custom_call.1} parent=1 // pred_fallthru
      _
    // Predicated region
    $region14: #{tpu_custom_call.1} parent=1 // pred_check
      _
    $region15: #{tpu_custom_call.1} parent=1 // pred_check_branch
      %49 = sbr.rel (0) target = $region17
    $region16: #{tpu_custom_call.1} parent=1 // pred_region
      %51 = dma.done [#allocation7], 192
    $region17: #{tpu_custom_call.1} parent=1 // pred_fallthru
      _
    // Predicated region
    $region18: #{tpu_custom_call.1} parent=1 // pred_check
      _
    $region19: #{tpu_custom_call.1} parent=1 // pred_check_branch
      %53 = sbr.rel (0) target = $region21
    $region20: #{tpu_custom_call.1} parent=1 // pred_region
      %55 = dma.done [#allocation10], 192
    $region21: #{tpu_custom_call.1} parent=1 // pred_fallthru
      _
    // Predicated region
    $region22: #{tpu_custom_call.1} parent=1 // pred_check
      _
    $region23: #{tpu_custom_call.1} parent=1 // pred_check_branch
      %57 = sbr.rel (0) target = $region25
    $region24: #{tpu_custom_call.1} parent=1 // pred_region
      %59 = dma.done [#allocation10], 32
    $region25: #{tpu_custom_call.1} parent=1 // pred_fallthru
      _
    %p60 = scmp.eq.s32.totalorder 0, 0
    // Predicated region
    $region26: #{tpu_custom_call.1} parent=1 // pred_check
      %p61 = pneg %p60
    $region27: #{tpu_custom_call.1} parent=1 // pred_check_branch
      %63 = sbr.rel (%p61) target = $region29
    $region28: #{tpu_custom_call.1} parent=1 // pred_region
      %vm64 = vcmask 0
      %65 = vst.msk [vmem:[#allocation2] sm:$0x1] %vm64, 0.0
      %66 = vst.msk [vmem:[#allocation3] sm:$0x1] %vm64, 0.0
      %67 = vst.msk [vmem:[#allocation4] sm:$0x1] %vm64, 0.0
      %68 = vst.msk [vmem:[#allocation5] sm:$0x1] %vm64, 0.0
    $region29: #{tpu_custom_call.1} parent=1 // pred_fallthru
      _
    %v69 = vld [vmem:[#allocation6] sm:$0xf]
    %v70 = vmul.f32 %v69, 30.0
    %s71 = scalar_lea.vmem [#allocation6], 4
    %v72 = vld [vmem:[%s71] sm:$0xf]
    %v73 = vmul.f32 %v72, 30.0
    %s74 = scalar_lea.vmem [#allocation6], 8
    %v75 = vld [vmem:[%s74] sm:$0xf]
    %v76 = vmul.f32 %v75, 100.0
    %v77 = vld [vmem:[#allocation9] sm:$0xf]
    %v78 = vmul.f32 %v77, 30.0
    %s79 = scalar_lea.vmem [#allocation9], 4
    %v80 = vld [vmem:[%s79] sm:$0xf]
    %v81 = vmul.f32 %v80, 30.0
    %s82 = scalar_lea.vmem [#allocation9], 8
    %v83 = vld [vmem:[%s82] sm:$0xf]
    %v84 = vmul.f32 %v83, 100.0
    %v85 = vsub.f32 %v70, %v78
    %v86 = vmul.f32 %v85, %v85
    %v87 = vsub.f32 %v73, %v81
    %v88 = vmul.f32 %v87, %v87
    %v89 = vadd.f32 %v86, %v88
    %v90 = vsub.f32 %v76, %v84
    %v91 = vmul.f32 %v90, %v90
    %v92 = vld [vmem:[#allocation11] sm:$0x3]
    %vm93 = vcmp.eq.f32.partialorder %v92, 0.0
    %vm94 = vcmp.ne.f32.partialorder %v89, %v89
    %vm95 = vmxor %vm94, 1
    %v96 = vsel %vm95, %v89, 0.0
    %98 = vst [vmem:[#allocation1] ss:$4 sm:$0xff] %v96
    %v99 = vld.sshfl [vmem:[#allocation1] sm:$0xff pattern:$0x73625140]
    %v100 = vld.sshfl [vmem:[#allocation1 + $0x8] sm:$0xff pattern:$0x73625140]
    %vm103 = vcmask 1041408
    %v104 = vsel %vm103, %v99, 0.0
    %v105 = vrot.slane %v104, 4
    %v106 = vadd.f32 %v104, %v105
    %v107 = vrot.slane %v106, 2
    %v108 = vadd.f32 %v106, %v107
    %v109 = vrot.slane %v108, 1
    %v110 = vadd.f32 %v108, %v109
    %v111 = vsel %vm103, %v100, 0.0
    %v112 = vrot.slane %v111, 4
    %v113 = vadd.f32 %v111, %v112
    %v114 = vrot.slane %v113, 2
    %v115 = vadd.f32 %v113, %v114
    %v116 = vrot.slane %v115, 1
    %v117 = vadd.f32 %v115, %v116
    %v118 = vsel %vm95, 1.0, 0.0
    %120 = vst [vmem:[#allocation1] ss:$4 sm:$0xff] %v118
    %v121 = vld.sshfl [vmem:[#allocation1] sm:$0xff pattern:$0x73625140]
    %v122 = vld.sshfl [vmem:[#allocation1 + $0x8] sm:$0xff pattern:$0x73625140]
    %v125 = vsel %vm103, %v121, 0.0
    %v126 = vrot.slane %v125, 4
    %v127 = vadd.f32 %v125, %v126
    %v128 = vrot.slane %v127, 2
    %v129 = vadd.f32 %v127, %v128
    %v130 = vrot.slane %v129, 1
    %v131 = vadd.f32 %v129, %v130
    %v132 = vsel %vm103, %v122, 0.0
    %v133 = vrot.slane %v132, 4
    %v134 = vadd.f32 %v132, %v133
    %v135 = vrot.slane %v134, 2
    %v136 = vadd.f32 %v134, %v135
    %v137 = vrot.slane %v136, 1
    %v138 = vadd.f32 %v136, %v137
    %v139 = vrcp.pop %v131
    %v140 = vmul.f32 %v131, %v139
    %v141 = vsub.f32 1.0, %v140
    %v142 = vmul.f32 %v139, %v141
    %v143 = vadd.f32 %v139, %v142
    %vm144 = vweird.f32 %v131
    %vm145 = vweird.f32 %v139
    %vm146 = vmor %vm144, %vm145
    %v147 = vsel %vm146, %v139, %v143
    %v148 = vand.u32 2147483647, %v131
    %vm149 = vcmp.eq.f32.partialorder %v148, 8.507059e+37
    %v150 = vand.u32 %v131, 2147483648
    %v151 = vor.u32 1.1754944e-38, %v150
    %v152 = vsel %vm149, %v151, %v147
    %v153 = vmul.f32 %v110, %v152
    %v154 = vrcp.pop %v138
    %v155 = vmul.f32 %v138, %v154
    %v156 = vsub.f32 1.0, %v155
    %v157 = vmul.f32 %v154, %v156
    %v158 = vadd.f32 %v154, %v157
    %vm159 = vweird.f32 %v138
    %vm160 = vweird.f32 %v154
    %vm161 = vmor %vm159, %vm160
    %v162 = vsel %vm161, %v154, %v158
    %v163 = vand.u32 2147483647, %v138
    %vm164 = vcmp.eq.f32.partialorder %v163, 8.507059e+37
    %v165 = vand.u32 %v138, 2147483648
    %v166 = vor.u32 1.1754944e-38, %v165
    %v167 = vsel %vm164, %v166, %v162
    %v168 = vmul.f32 %v117, %v167
    %vm169 = vcmp.ne.f32.partialorder %v153, %v153
    %vm170 = vcmp.ne.f32.partialorder %v168, %v168
    %vm171 = vmxor %vm169, 1
    %vm172 = vmxor %vm170, 1
    %v173 = vsel %vm171, 1, 0
    %v174 = vsel %vm172, 1, 0
    %v175 = vrot.slane %v174, 7
    %vm176 = vcmask 1040384
    %v177 = vsel %vm176, %v173, %v175
    %vm178 = vcmp.ne.s32.totalorder %v177, 0
    %vm179 = vmand %vm93, %vm178
    %v182 = vrot.slane %v168, 7
    %v183 = vsel %vm176, %v153, %v182
    %v185 = vsel %vm179, %v183, 0.0
    %v187 = vperm.slane %v185, 0
    %v188 = vperm.slane %v185, 1
    %v191 = vsel %vm176, %v187, 0.0
    %v192 = vsel %vm176, %v188, 0.0
    %v193 = vadd.f32 %v191, %v192
    %194 = vadd.xlane.f32.xlu0 %v193
    %v195 = vpop.xlane.xlu0 %194
    %v196 = vsel %vm179, 1.0, 0.0
    %v198 = vperm.slane %v196, 0
    %v199 = vperm.slane %v196, 1
    %v202 = vsel %vm176, %v198, 0.0
    %v203 = vsel %vm176, %v199, 0.0
    %v204 = vadd.f32 %v202, %v203
    %205 = vadd.xlane.f32.xlu0 %v204
    %v206 = vpop.xlane.xlu0 %205
    %vm207 = vcmp.ne.f32.partialorder %v91, %v91
    %vm208 = vmxor %vm207, 1
    %v209 = vsel %vm208, %v91, 0.0
    %211 = vst [vmem:[#allocation1] ss:$4 sm:$0xff] %v209
    %v212 = vld.sshfl [vmem:[#allocation1] sm:$0xff pattern:$0x73625140]
    %v213 = vld.sshfl [vmem:[#allocation1 + $0x8] sm:$0xff pattern:$0x73625140]
    %v216 = vsel %vm103, %v212, 0.0
    %v217 = vrot.slane %v216, 4
    %v218 = vadd.f32 %v216, %v217
    %v219 = vrot.slane %v218, 2
    %v220 = vadd.f32 %v218, %v219
    %v221 = vrot.slane %v220, 1
    %v222 = vadd.f32 %v220, %v221
    %v223 = vsel %vm103, %v213, 0.0
    %v224 = vrot.slane %v223, 4
    %v225 = vadd.f32 %v223, %v224
    %v226 = vrot.slane %v225, 2
    %v227 = vadd.f32 %v225, %v226
    %v228 = vrot.slane %v227, 1
    %v229 = vadd.f32 %v227, %v228
    %v230 = vsel %vm208, 1.0, 0.0
    %232 = vst [vmem:[#allocation1] ss:$4 sm:$0xff] %v230
    %v233 = vld.sshfl [vmem:[#allocation1] sm:$0xff pattern:$0x73625140]
    %v234 = vld.sshfl [vmem:[#allocation1 + $0x8] sm:$0xff pattern:$0x73625140]
    %v237 = vsel %vm103, %v233, 0.0
    %v238 = vrot.slane %v237, 4
    %v239 = vadd.f32 %v237, %v238
    %v240 = vrot.slane %v239, 2
    %v241 = vadd.f32 %v239, %v240
    %v242 = vrot.slane %v241, 1
    %v243 = vadd.f32 %v241, %v242
    %v244 = vsel %vm103, %v234, 0.0
    %v245 = vrot.slane %v244, 4
    %v246 = vadd.f32 %v244, %v245
    %v247 = vrot.slane %v246, 2
    %v248 = vadd.f32 %v246, %v247
    %v249 = vrot.slane %v248, 1
    %v250 = vadd.f32 %v248, %v249
    %v251 = vrcp.pop %v243
    %v252 = vmul.f32 %v243, %v251
    %v253 = vsub.f32 1.0, %v252
    %v254 = vmul.f32 %v251, %v253
    %v255 = vadd.f32 %v251, %v254
    %vm256 = vweird.f32 %v243
    %vm257 = vweird.f32 %v251
    %vm258 = vmor %vm256, %vm257
    %v259 = vsel %vm258, %v251, %v255
    %v260 = vand.u32 2147483647, %v243
    %vm261 = vcmp.eq.f32.partialorder %v260, 8.507059e+37
    %v262 = vand.u32 %v243, 2147483648
    %v263 = vor.u32 1.1754944e-38, %v262
    %v264 = vsel %vm261, %v263, %v259
    %v265 = vmul.f32 %v222, %v264
    %v266 = vrcp.pop %v250
    %v267 = vmul.f32 %v250, %v266
    %v268 = vsub.f32 1.0, %v267
    %v269 = vmul.f32 %v266, %v268
    %v270 = vadd.f32 %v266, %v269
    %vm271 = vweird.f32 %v250
    %vm272 = vweird.f32 %v266
    %vm273 = vmor %vm271, %vm272
    %v274 = vsel %vm273, %v266, %v270
    %v275 = vand.u32 2147483647, %v250
    %vm276 = vcmp.eq.f32.partialorder %v275, 8.507059e+37
    %v277 = vand.u32 %v250, 2147483648
    %v278 = vor.u32 1.1754944e-38, %v277
    %v279 = vsel %vm276, %v278, %v274
    %v280 = vmul.f32 %v229, %v279
    %vm281 = vcmp.ne.f32.partialorder %v265, %v265
    %vm282 = vcmp.ne.f32.partialorder %v280, %v280
    %vm283 = vmxor %vm281, 1
    %vm284 = vmxor %vm282, 1
    %v285 = vsel %vm283, 1, 0
    %v286 = vsel %vm284, 1, 0
    %v287 = vrot.slane %v286, 7
    %v288 = vsel %vm176, %v285, %v287
    %vm289 = vcmp.ne.s32.totalorder %v288, 0
    %vm290 = vmand %vm93, %vm289
    %v293 = vrot.slane %v280, 7
    %v294 = vsel %vm176, %v265, %v293
    %v296 = vsel %vm290, %v294, 0.0
    %v298 = vperm.slane %v296, 0
    %v299 = vperm.slane %v296, 1
    %v302 = vsel %vm176, %v298, 0.0
    %v303 = vsel %vm176, %v299, 0.0
    %v304 = vadd.f32 %v302, %v303
    %305 = vadd.xlane.f32.xlu0 %v304
    %v306 = vpop.xlane.xlu0 %305
    %v307 = vsel %vm290, 1.0, 0.0
    %v309 = vperm.slane %v307, 0
    %v310 = vperm.slane %v307, 1
    %v313 = vsel %vm176, %v309, 0.0
    %v314 = vsel %vm176, %v310, 0.0
    %v315 = vadd.f32 %v313, %v314
    %316 = vadd.xlane.f32.xlu0 %v315
    %v317 = vpop.xlane.xlu0 %316
    %v318 = vld [vmem:[#allocation2] sm:$0x1]
    %v319 = vadd.f32 %v318, %v195
    %vm320 = vcmask 0
    %321 = vst.msk [vmem:[#allocation2] sm:$0x1] %vm320, %v319
    %v322 = vld [vmem:[#allocation3] sm:$0x1]
    %v323 = vadd.f32 %v322, %v206
    %324 = vst.msk [vmem:[#allocation3] sm:$0x1] %vm320, %v323
    %v325 = vld [vmem:[#allocation4] sm:$0x1]
    %v326 = vadd.f32 %v325, %v306
    %327 = vst.msk [vmem:[#allocation4] sm:$0x1] %vm320, %v326
    %v328 = vld [vmem:[#allocation5] sm:$0x1]
    %v329 = vadd.f32 %v328, %v317
    %330 = vst.msk [vmem:[#allocation5] sm:$0x1] %vm320, %v329
    // Predicated region
    $region30: #{tpu_custom_call.1} parent=1 // pred_check
      %p331 = pneg %p60
    $region31: #{tpu_custom_call.1} parent=1 // pred_check_branch
      %333 = sbr.rel (%p331) target = $region33
    $region32: #{tpu_custom_call.1} parent=1 // pred_region
      %v334 = vld [vmem:[#allocation2] sm:$0x1]
      %v335 = vld [vmem:[#allocation3] sm:$0x1]
      %v336 = vrcp.pop %v335
      %v337 = vmul.f32 %v335, %v336
      %v338 = vsub.f32 1.0, %v337
      %v339 = vmul.f32 %v336, %v338
      %v340 = vadd.f32 %v336, %v339
      %vm341 = vweird.f32 %v335
      %vm342 = vweird.f32 %v336
      %vm343 = vmor %vm341, %vm342
      %v344 = vsel %vm343, %v336, %v340
      %v345 = vand.u32 2147483647, %v335
      %vm346 = vcmp.eq.f32.partialorder %v345, 8.507059e+37
      %v347 = vand.u32 %v335, 2147483648
      %v348 = vor.u32 1.1754944e-38, %v347
      %v349 = vsel %vm346, %v348, %v344
      %v350 = vmul.f32 %v334, %v349
      %v351 = vld [vmem:[#allocation4] sm:$0x1]
      %v352 = vld [vmem:[#allocation5] sm:$0x1]
      %v353 = vrcp.pop %v352
      %v354 = vmul.f32 %v352, %v353
      %v355 = vsub.f32 1.0, %v354
      %v356 = vmul.f32 %v353, %v355
      %v357 = vadd.f32 %v353, %v356
      %vm358 = vweird.f32 %v352
      %vm359 = vweird.f32 %v353
      %vm360 = vmor %vm358, %vm359
      %v361 = vsel %vm360, %v353, %v357
      %v362 = vand.u32 2147483647, %v352
      %vm363 = vcmp.eq.f32.partialorder %v362, 8.507059e+37
      %v364 = vand.u32 %v352, 2147483648
      %v365 = vor.u32 1.1754944e-38, %v364
      %v366 = vsel %vm363, %v365, %v361
      %v367 = vmul.f32 %v351, %v366
      %v368 = vadd.f32 %v350, %v367
      %v369 = vmul.f32 %v368, 10.0
      %370 = vst.msk [vmem:[#allocation12] sm:$0x1] %vm320, %v369
    $region33: #{tpu_custom_call.1} parent=1 // pred_fallthru
      _
    // Predicated region
    $region34: #{tpu_custom_call.1} parent=1 // pred_check
      _
    $region35: #{tpu_custom_call.1} parent=1 // pred_check_branch
      %372 = sbr.rel (0) target = $region37
    $region36: #{tpu_custom_call.1} parent=1 // pred_region
      %374 = vsyncadd [#allocation8], 0
      %s376 = sshll.u32 [#allocation12], 4
      %s377 = int_to_ptr.vmem [resolvable:$true] %s376
      %s378 = sshll.u32 %s3, 4
      %s379 = int_to_ptr.hbm [resolvable:$true] %s378
      %381 = dma.vmem_to_hbm [thread:$0]  %s377, 16, %s379, [#allocation8]
    $region37: #{tpu_custom_call.1} parent=1 // pred_fallthru
      _
    // Predicated region
    $region38: #{tpu_custom_call.1} parent=1 // pred_check
      _
    $region39: #{tpu_custom_call.1} parent=1 // pred_check_branch
      %383 = sbr.rel (0) target = $region41
    $region40: #{tpu_custom_call.1} parent=1 // pred_region
      %385 = dma.done [#allocation8], 16
    $region41: #{tpu_custom_call.1} parent=1 // pred_fallthru
      _
    %386 = vsyncpa [#allocation7], 1
    %387 = vsyncpa [#allocation10], 1
    %388 = vsyncpa [#allocation8], 1

</llo_original>
